<compile_context>
chip_gen: v7x
topology: tpu7x:2x2x1
jax: 0.10.0
libtpu: 0.0.40
codegen_flags: <defaults>
</compile_context>

<pallas_src>
from functools import partial

import jax
import jax.numpy as jnp
from jax.experimental import pallas as pl


def _window_copy_kernel(n_in, windows, *refs):
    """Copy static lane-windows from input refs to output refs.

    windows[k] = (src_input_index, start, size):
        out_refs[k][...] <- in_refs[src][:, start:start+size]

    All offsets/sizes are Python ints (static slices).  128-aligned windows
    lower to unmasked full-lane vector stores; unaligned windows fall back to
    lane shifts + masked stores but stay correct.
    """
    in_refs = refs[:n_in]
    out_refs = refs[n_in:]
    for (src, start, size), o_ref in zip(windows, out_refs):
        o_ref[...] = in_refs[src][:, start:start + size]


def fused_pos_neg_split(irs_fields, ars_fields, batch_size_irs, batch_size_ars):
    """Single fused Pallas launch splitting all 8 RHINE batch arrays.

    irs_fields / ars_fields: 4-tuples (h, t, r, w) of 1-D arrays (dtypes kept).
    Returns (pos_IRs, neg_IRs, pos_ARs, neg_ARs), each a 4-tuple (h, t, r, w).
    Empty windows are returned as 0-length arrays without touching the kernel.
    """
    irs_fields = tuple(jnp.asarray(a) for a in irs_fields)
    ars_fields = tuple(jnp.asarray(a) for a in ars_fields)
    all_in = irs_fields + ars_fields                       # 8 arrays
    seq_irs = int(irs_fields[0].shape[0])
    seq_ars = int(ars_fields[0].shape[0])
    bs_irs = int(batch_size_irs)
    bs_ars = int(batch_size_ars)
    assert all(a.ndim == 1 and a.shape[0] == seq_irs for a in irs_fields)
    assert all(a.ndim == 1 and a.shape[0] == seq_ars for a in ars_fields)
    assert seq_irs > 0 and seq_ars > 0
    assert 0 <= bs_irs <= seq_irs and 0 <= bs_ars <= seq_ars

    # (seq,) -> (1, seq): row-major layout-preserving reshape (no HBM traffic);
    # the long axis maps to the 128-lane axis inside the kernel.
    ins_2d = [a.reshape(1, a.shape[0]) for a in all_in]

    # group 0 = pos_IRs, 1 = neg_IRs, 2 = pos_ARs, 3 = neg_ARs
    group_defs = (
        (0, 0, 0, bs_irs),
        (1, 0, bs_irs, seq_irs - bs_irs),
        (2, 4, 0, bs_ars),
        (3, 4, bs_ars, seq_ars - bs_ars),
    )

    windows, placements, out_shapes = [], [], []
    for group, src_base, start, size in group_defs:
        if size == 0:
            continue                     # zero-sized outputs do not lower
        for f in range(4):
            src = src_base + f
            windows.append((src, start, size))
            placements.append((group, f))
            out_shapes.append(jax.ShapeDtypeStruct((1, size), all_in[src].dtype))

    kernel = partial(_window_copy_kernel, len(ins_2d), tuple(windows))
    outs = pl.pallas_call(
        kernel,
        out_shape=tuple(out_shapes),
        grid=(1,),
        in_specs=[pl.BlockSpec(x.shape, lambda i: (0, 0)) for x in ins_2d],
        out_specs=tuple(pl.BlockSpec(s.shape, lambda i: (0, 0))
                        for s in out_shapes),
    )(*ins_2d)

    results = [[None] * 4 for _ in range(4)]
    for (group, f), o in zip(placements, outs):
        results[group][f] = o.reshape(-1)
    for group, src_base, start, size in group_defs:
        if size == 0:
            for f in range(4):
                results[group][f] = jnp.zeros((0,), all_in[src_base + f].dtype)
    return tuple(tuple(r) for r in results)


class Config:
    """Analogue of the RHINE config holding per-relation-type batch arrays."""

    def __init__(self, batch_size_IRs, batch_seq_size_IRs,
                 batch_size_ARs, batch_seq_size_ARs):
        self.batch_size_IRs = batch_size_IRs
        self.batch_seq_size_IRs = batch_seq_size_IRs
        self.batch_size_ARs = batch_size_ARs
        self.batch_seq_size_ARs = batch_seq_size_ARs
        # filled in by the caller (analogue of config.batch_h_IRs etc.)
        self.batch_h_IRs = None
        self.batch_t_IRs = None
        self.batch_r_IRs = None
        self.batch_w_IRs = None
        self.batch_h_ARs = None
        self.batch_t_ARs = None
        self.batch_r_ARs = None
        self.batch_w_ARs = None


class Model:
    """JAX/Pallas analogue of the RHINE base Model."""

    def __init__(self, config):
        self.config = config
        self._split_cache = None
        self._split_key = None   # cache keyed on batch identity -> auto-invalidated

    def _batch_key(self):
        cfg = self.config
        arrays = (cfg.batch_h_IRs, cfg.batch_t_IRs, cfg.batch_r_IRs, cfg.batch_w_IRs,
                  cfg.batch_h_ARs, cfg.batch_t_ARs, cfg.batch_r_ARs, cfg.batch_w_ARs)
        return (tuple(id(a) for a in arrays),
                int(cfg.batch_size_IRs), int(cfg.batch_size_ARs))

    def _split(self):
        key = self._batch_key()
        if self._split_cache is None or self._split_key != key:
            cfg = self.config
            irs = (cfg.batch_h_IRs, cfg.batch_t_IRs, cfg.batch_r_IRs, cfg.batch_w_IRs)
            ars = (cfg.batch_h_ARs, cfg.batch_t_ARs, cfg.batch_r_ARs, cfg.batch_w_ARs)
            self._split_cache = fused_pos_neg_split(
                irs, ars, cfg.batch_size_IRs, cfg.batch_size_ARs)
            self._split_key = key
        return self._split_cache

    def get_postive_IRs(self):
        pos_irs, _, _, _ = self._split()
        h, t, r, w = pos_irs
        self.postive_h_IRs, self.postive_t_IRs = h, t
        self.postive_r_IRs, self.postive_w_IRs = r, w
        return h, t, r, w

    def get_negtive_IRs(self):
        _, neg_irs, _, _ = self._split()
        h, t, r, w = neg_irs
        self.negtive_h_IRs, self.negtive_t_IRs = h, t
        self.negtive_r_IRs, self.negtive_w_IRs = r, w
        return h, t, r, w

    def get_postive_ARs(self):
        _, _, pos_ars, _ = self._split()
        h, t, r, w = pos_ars
        self.postive_h_ARs, self.postive_t_ARs = h, t
        self.postive_r_ARs, self.postive_w_ARs = r, w
        return h, t, r, w

    def get_negtive_ARs(self):
        _, _, _, neg_ars = self._split()
        h, t, r, w = neg_ars
        self.negtive_h_ARs, self.negtive_t_ARs = h, t
        self.negtive_r_ARs, self.negtive_w_ARs = r, w
        return h, t, r, w

    def predict(self):
        pass

    def forward(self):
        # TODO(synk): reference forward() is `pass`; scoring/loss live only in
        # RHINE subclasses, so there is no additional compute to translate.
        pass

    def loss_func(self):
        pass


def _fill_config(cfg, key):
    ks = jax.random.split(key, 8)
    si = int(cfg.batch_seq_size_IRs)
    sa = int(cfg.batch_seq_size_ARs)
    cfg.batch_h_IRs = jax.random.randint(ks[0], (si,), 0, 1000, dtype=jnp.int32)
    cfg.batch_t_IRs = jax.random.randint(ks[1], (si,), 0, 1000, dtype=jnp.int32)
    cfg.batch_r_IRs = jax.random.randint(ks[2], (si,), 0, 10, dtype=jnp.int32)
    cfg.batch_w_IRs = jax.random.uniform(ks[3], (si,), dtype=jnp.float32)
    cfg.batch_h_ARs = jax.random.randint(ks[4], (sa,), 0, 1000, dtype=jnp.int32)
    cfg.batch_t_ARs = jax.random.randint(ks[5], (sa,), 0, 1000, dtype=jnp.int32)
    cfg.batch_r_ARs = jax.random.randint(ks[6], (sa,), 0, 10, dtype=jnp.int32)
    cfg.batch_w_ARs = jax.random.uniform(ks[7], (sa,), dtype=jnp.float32)


def _check_split(model, cfg):
    """Run all four getters and check against plain-JAX slicing (torch semantics)."""
    pos_irs = model.get_postive_IRs()   # first getter triggers the single fused launch
    neg_irs = model.get_negtive_IRs()   # served from cache (no extra launch)
    pos_ars = model.get_postive_ARs()
    neg_ars = model.get_negtive_ARs()
    outs = jax.block_until_ready((pos_irs, neg_irs, pos_ars, neg_ars))

    bs_i, seq_i = int(cfg.batch_size_IRs), int(cfg.batch_seq_size_IRs)
    bs_a, seq_a = int(cfg.batch_size_ARs), int(cfg.batch_seq_size_ARs)
    irs_ref = (cfg.batch_h_IRs, cfg.batch_t_IRs, cfg.batch_r_IRs, cfg.batch_w_IRs)
    ars_ref = (cfg.batch_h_ARs, cfg.batch_t_ARs, cfg.batch_r_ARs, cfg.batch_w_ARs)

    checks = (
        (outs[0], irs_ref, 0, bs_i),
        (outs[1], irs_ref, bs_i, seq_i),
        (outs[2], ars_ref, 0, bs_a),
        (outs[3], ars_ref, bs_a, seq_a),
    )
    for got, ref_fields, lo, hi in checks:
        for g, r in zip(got, ref_fields):
            expect = jnp.asarray(r)[lo:hi]
            assert g.shape == expect.shape, (g.shape, expect.shape)
            assert g.dtype == expect.dtype, (g.dtype, expect.dtype)
            assert jnp.array_equal(g, expect)
    return outs


if __name__ == "__main__":
    root = jax.random.PRNGKey(0)
    k1, k2, k3 = jax.random.split(root, 3)

    # --- Batch 1: 128-aligned split points (lane-dense, unmasked stores). ---
    cfg = Config(128, 256, 128, 384)
    _fill_config(cfg, k1)
    model = Model(cfg)
    model.forward()          # no-op per spec; tensor path lives in the getters
    _check_split(model, cfg)

    # --- Batch 2: same Model, new batch arrays -> cache must invalidate. ---
    _fill_config(cfg, k2)
    _check_split(model, cfg)

    # --- Batch 3: non-128-multiple batch_size (masked-store path) for IRs,
    #     and bs == seq (empty negative window) for ARs. ---
    cfg2 = Config(96, 224, 128, 128)
    _fill_config(cfg2, k3)
    model2 = Model(cfg2)
    outs2 = _check_split(model2, cfg2)
    assert outs2[1][0].shape == (224 - 96,)      # unaligned negative-IRs window
    assert outs2[3][0].shape == (0,)             # empty negative-ARs window
    assert outs2[3][3].dtype == jnp.float32      # w dtype preserved

    print("KERNEL_OK")
</pallas_src>

<mosaic_0001>
module attributes {stable_mosaic.version = 11 : i64} {
  func.func @_window_copy_kernel(%arg0: i32, %arg1: memref<1x256xi32, #tpu.memory_space<vmem>>, %arg2: memref<1x256xi32, #tpu.memory_space<vmem>>, %arg3: memref<1x256xi32, #tpu.memory_space<vmem>>, %arg4: memref<1x256xf32, #tpu.memory_space<vmem>>, %arg5: memref<1x384xi32, #tpu.memory_space<vmem>>, %arg6: memref<1x384xi32, #tpu.memory_space<vmem>>, %arg7: memref<1x384xi32, #tpu.memory_space<vmem>>, %arg8: memref<1x384xf32, #tpu.memory_space<vmem>>, %arg9: memref<1x128xi32, #tpu.memory_space<vmem>>, %arg10: memref<1x128xi32, #tpu.memory_space<vmem>>, %arg11: memref<1x128xi32, #tpu.memory_space<vmem>>, %arg12: memref<1x128xf32, #tpu.memory_space<vmem>>, %arg13: memref<1x128xi32, #tpu.memory_space<vmem>>, %arg14: memref<1x128xi32, #tpu.memory_space<vmem>>, %arg15: memref<1x128xi32, #tpu.memory_space<vmem>>, %arg16: memref<1x128xf32, #tpu.memory_space<vmem>>, %arg17: memref<1x128xi32, #tpu.memory_space<vmem>>, %arg18: memref<1x128xi32, #tpu.memory_space<vmem>>, %arg19: memref<1x128xi32, #tpu.memory_space<vmem>>, %arg20: memref<1x128xf32, #tpu.memory_space<vmem>>, %arg21: memref<1x256xi32, #tpu.memory_space<vmem>>, %arg22: memref<1x256xi32, #tpu.memory_space<vmem>>, %arg23: memref<1x256xi32, #tpu.memory_space<vmem>>, %arg24: memref<1x256xf32, #tpu.memory_space<vmem>>) attributes {dimension_semantics = [#tpu.dimension_semantics<arbitrary>], iteration_bounds = array<i64: 1>, scalar_prefetch = 0 : i64, scratch_operands = 0 : i64, tpu.core_type = #tpu.core_type<tc>, window_params = [{pipeline_mode = #tpu.pipeline_mode<synchronous>, transform_indices = @transform_0, window_bounds = array<i64: 1, 256>}, {pipeline_mode = #tpu.pipeline_mode<synchronous>, transform_indices = @transform_1, window_bounds = array<i64: 1, 256>}, {pipeline_mode = #tpu.pipeline_mode<synchronous>, transform_indices = @transform_2, window_bounds = array<i64: 1, 256>}, {pipeline_mode = #tpu.pipeline_mode<synchronous>, transform_indices = @transform_3, window_bounds = array<i64: 1, 256>}, {pipeline_mode = #tpu.pipeline_mode<synchronous>, transform_indices = @transform_4, window_bounds = array<i64: 1, 384>}, {pipeline_mode = #tpu.pipeline_mode<synchronous>, transform_indices = @transform_5, window_bounds = array<i64: 1, 384>}, {pipeline_mode = #tpu.pipeline_mode<synchronous>, transform_indices = @transform_6, window_bounds = array<i64: 1, 384>}, {pipeline_mode = #tpu.pipeline_mode<synchronous>, transform_indices = @transform_7, window_bounds = array<i64: 1, 384>}, {pipeline_mode = #tpu.pipeline_mode<synchronous>, transform_indices = @transform_8, window_bounds = array<i64: 1, 128>}, {pipeline_mode = #tpu.pipeline_mode<synchronous>, transform_indices = @transform_9, window_bounds = array<i64: 1, 128>}, {pipeline_mode = #tpu.pipeline_mode<synchronous>, transform_indices = @transform_10, window_bounds = array<i64: 1, 128>}, {pipeline_mode = #tpu.pipeline_mode<synchronous>, transform_indices = @transform_11, window_bounds = array<i64: 1, 128>}, {pipeline_mode = #tpu.pipeline_mode<synchronous>, transform_indices = @transform_12, window_bounds = array<i64: 1, 128>}, {pipeline_mode = #tpu.pipeline_mode<synchronous>, transform_indices = @transform_13, window_bounds = array<i64: 1, 128>}, {pipeline_mode = #tpu.pipeline_mode<synchronous>, transform_indices = @transform_14, window_bounds = array<i64: 1, 128>}, {pipeline_mode = #tpu.pipeline_mode<synchronous>, transform_indices = @transform_15, window_bounds = array<i64: 1, 128>}, {pipeline_mode = #tpu.pipeline_mode<synchronous>, transform_indices = @transform_16, window_bounds = array<i64: 1, 128>}, {pipeline_mode = #tpu.pipeline_mode<synchronous>, transform_indices = @transform_17, window_bounds = array<i64: 1, 128>}, {pipeline_mode = #tpu.pipeline_mode<synchronous>, transform_indices = @transform_18, window_bounds = array<i64: 1, 128>}, {pipeline_mode = #tpu.pipeline_mode<synchronous>, transform_indices = @transform_19, window_bounds = array<i64: 1, 128>}, {pipeline_mode = #tpu.pipeline_mode<synchronous>, transform_indices = @transform_20, window_bounds = array<i64: 1, 256>}, {pipeline_mode = #tpu.pipeline_mode<synchronous>, transform_indices = @transform_21, window_bounds = array<i64: 1, 256>}, {pipeline_mode = #tpu.pipeline_mode<synchronous>, transform_indices = @transform_22, window_bounds = array<i64: 1, 256>}, {pipeline_mode = #tpu.pipeline_mode<synchronous>, transform_indices = @transform_23, window_bounds = array<i64: 1, 256>}]} {
    %c0 = arith.constant 0 : index
    %c0_0 = arith.constant 0 : index
    %0 = vector.load %arg1[%c0, %c0_0] : memref<1x256xi32, #tpu.memory_space<vmem>>, vector<1x128xi32>
    %c0_1 = arith.constant 0 : index
    %c0_2 = arith.constant 0 : index
    %1 = vector.load %arg9[%c0_1, %c0_2] : memref<1x128xi32, #tpu.memory_space<vmem>>, vector<1x128xi32>
    tpu.vector_store %arg9[%c0_1, %c0_2], %0 {strides = array<i32>} : memref<1x128xi32, #tpu.memory_space<vmem>>, vector<1x128xi32>,
    %c0_3 = arith.constant 0 : index
    %c0_4 = arith.constant 0 : index
    %2 = vector.load %arg2[%c0_3, %c0_4] : memref<1x256xi32, #tpu.memory_space<vmem>>, vector<1x128xi32>
    %c0_5 = arith.constant 0 : index
    %c0_6 = arith.constant 0 : index
    %3 = vector.load %arg10[%c0_5, %c0_6] : memref<1x128xi32, #tpu.memory_space<vmem>>, vector<1x128xi32>
    tpu.vector_store %arg10[%c0_5, %c0_6], %2 {strides = array<i32>} : memref<1x128xi32, #tpu.memory_space<vmem>>, vector<1x128xi32>,
    %c0_7 = arith.constant 0 : index
    %c0_8 = arith.constant 0 : index
    %4 = vector.load %arg3[%c0_7, %c0_8] : memref<1x256xi32, #tpu.memory_space<vmem>>, vector<1x128xi32>
    %c0_9 = arith.constant 0 : index
    %c0_10 = arith.constant 0 : index
    %5 = vector.load %arg11[%c0_9, %c0_10] : memref<1x128xi32, #tpu.memory_space<vmem>>, vector<1x128xi32>
    tpu.vector_store %arg11[%c0_9, %c0_10], %4 {strides = array<i32>} : memref<1x128xi32, #tpu.memory_space<vmem>>, vector<1x128xi32>,
    %c0_11 = arith.constant 0 : index
    %c0_12 = arith.constant 0 : index
    %6 = vector.load %arg4[%c0_11, %c0_12] : memref<1x256xf32, #tpu.memory_space<vmem>>, vector<1x128xf32>
    %c0_13 = arith.constant 0 : index
    %c0_14 = arith.constant 0 : index
    %7 = vector.load %arg12[%c0_13, %c0_14] : memref<1x128xf32, #tpu.memory_space<vmem>>, vector<1x128xf32>
    tpu.vector_store %arg12[%c0_13, %c0_14], %6 {strides = array<i32>} : memref<1x128xf32, #tpu.memory_space<vmem>>, vector<1x128xf32>,
    %c0_15 = arith.constant 0 : index
    %c128 = arith.constant 128 : index
    %8 = vector.load %arg1[%c0_15, %c128] : memref<1x256xi32, #tpu.memory_space<vmem>>, vector<1x128xi32>
    %c0_16 = arith.constant 0 : index
    %c0_17 = arith.constant 0 : index
    %9 = vector.load %arg13[%c0_16, %c0_17] : memref<1x128xi32, #tpu.memory_space<vmem>>, vector<1x128xi32>
    tpu.vector_store %arg13[%c0_16, %c0_17], %8 {strides = array<i32>} : memref<1x128xi32, #tpu.memory_space<vmem>>, vector<1x128xi32>,
    %c0_18 = arith.constant 0 : index
    %c128_19 = arith.constant 128 : index
    %10 = vector.load %arg2[%c0_18, %c128_19] : memref<1x256xi32, #tpu.memory_space<vmem>>, vector<1x128xi32>
    %c0_20 = arith.constant 0 : index
    %c0_21 = arith.constant 0 : index
    %11 = vector.load %arg14[%c0_20, %c0_21] : memref<1x128xi32, #tpu.memory_space<vmem>>, vector<1x128xi32>
    tpu.vector_store %arg14[%c0_20, %c0_21], %10 {strides = array<i32>} : memref<1x128xi32, #tpu.memory_space<vmem>>, vector<1x128xi32>,
    %c0_22 = arith.constant 0 : index
    %c128_23 = arith.constant 128 : index
    %12 = vector.load %arg3[%c0_22, %c128_23] : memref<1x256xi32, #tpu.memory_space<vmem>>, vector<1x128xi32>
    %c0_24 = arith.constant 0 : index
    %c0_25 = arith.constant 0 : index
    %13 = vector.load %arg15[%c0_24, %c0_25] : memref<1x128xi32, #tpu.memory_space<vmem>>, vector<1x128xi32>
    tpu.vector_store %arg15[%c0_24, %c0_25], %12 {strides = array<i32>} : memref<1x128xi32, #tpu.memory_space<vmem>>, vector<1x128xi32>,
    %c0_26 = arith.constant 0 : index
    %c128_27 = arith.constant 128 : index
    %14 = vector.load %arg4[%c0_26, %c128_27] : memref<1x256xf32, #tpu.memory_space<vmem>>, vector<1x128xf32>
    %c0_28 = arith.constant 0 : index
    %c0_29 = arith.constant 0 : index
    %15 = vector.load %arg16[%c0_28, %c0_29] : memref<1x128xf32, #tpu.memory_space<vmem>>, vector<1x128xf32>
    tpu.vector_store %arg16[%c0_28, %c0_29], %14 {strides = array<i32>} : memref<1x128xf32, #tpu.memory_space<vmem>>, vector<1x128xf32>,
    %c0_30 = arith.constant 0 : index
    %c0_31 = arith.constant 0 : index
    %16 = vector.load %arg5[%c0_30, %c0_31] : memref<1x384xi32, #tpu.memory_space<vmem>>, vector<1x128xi32>
    %c0_32 = arith.constant 0 : index
    %c0_33 = arith.constant 0 : index
    %17 = vector.load %arg17[%c0_32, %c0_33] : memref<1x128xi32, #tpu.memory_space<vmem>>, vector<1x128xi32>
    tpu.vector_store %arg17[%c0_32, %c0_33], %16 {strides = array<i32>} : memref<1x128xi32, #tpu.memory_space<vmem>>, vector<1x128xi32>,
    %c0_34 = arith.constant 0 : index
    %c0_35 = arith.constant 0 : index
    %18 = vector.load %arg6[%c0_34, %c0_35] : memref<1x384xi32, #tpu.memory_space<vmem>>, vector<1x128xi32>
    %c0_36 = arith.constant 0 : index
    %c0_37 = arith.constant 0 : index
    %19 = vector.load %arg18[%c0_36, %c0_37] : memref<1x128xi32, #tpu.memory_space<vmem>>, vector<1x128xi32>
    tpu.vector_store %arg18[%c0_36, %c0_37], %18 {strides = array<i32>} : memref<1x128xi32, #tpu.memory_space<vmem>>, vector<1x128xi32>,
    %c0_38 = arith.constant 0 : index
    %c0_39 = arith.constant 0 : index
    %20 = vector.load %arg7[%c0_38, %c0_39] : memref<1x384xi32, #tpu.memory_space<vmem>>, vector<1x128xi32>
    %c0_40 = arith.constant 0 : index
    %c0_41 = arith.constant 0 : index
    %21 = vector.load %arg19[%c0_40, %c0_41] : memref<1x128xi32, #tpu.memory_space<vmem>>, vector<1x128xi32>
    tpu.vector_store %arg19[%c0_40, %c0_41], %20 {strides = array<i32>} : memref<1x128xi32, #tpu.memory_space<vmem>>, vector<1x128xi32>,
    %c0_42 = arith.constant 0 : index
    %c0_43 = arith.constant 0 : index
    %22 = vector.load %arg8[%c0_42, %c0_43] : memref<1x384xf32, #tpu.memory_space<vmem>>, vector<1x128xf32>
    %c0_44 = arith.constant 0 : index
    %c0_45 = arith.constant 0 : index
    %23 = vector.load %arg20[%c0_44, %c0_45] : memref<1x128xf32, #tpu.memory_space<vmem>>, vector<1x128xf32>
    tpu.vector_store %arg20[%c0_44, %c0_45], %22 {strides = array<i32>} : memref<1x128xf32, #tpu.memory_space<vmem>>, vector<1x128xf32>,
    %c0_46 = arith.constant 0 : index
    %c128_47 = arith.constant 128 : index
    %24 = vector.load %arg5[%c0_46, %c128_47] : memref<1x384xi32, #tpu.memory_space<vmem>>, vector<1x256xi32>
    %c0_48 = arith.constant 0 : index
    %c0_49 = arith.constant 0 : index
    %25 = vector.load %arg21[%c0_48, %c0_49] : memref<1x256xi32, #tpu.memory_space<vmem>>, vector<1x256xi32>
    tpu.vector_store %arg21[%c0_48, %c0_49], %24 {strides = array<i32>} : memref<1x256xi32, #tpu.memory_space<vmem>>, vector<1x256xi32>,
    %c0_50 = arith.constant 0 : index
    %c128_51 = arith.constant 128 : index
    %26 = vector.load %arg6[%c0_50, %c128_51] : memref<1x384xi32, #tpu.memory_space<vmem>>, vector<1x256xi32>
    %c0_52 = arith.constant 0 : index
    %c0_53 = arith.constant 0 : index
    %27 = vector.load %arg22[%c0_52, %c0_53] : memref<1x256xi32, #tpu.memory_space<vmem>>, vector<1x256xi32>
    tpu.vector_store %arg22[%c0_52, %c0_53], %26 {strides = array<i32>} : memref<1x256xi32, #tpu.memory_space<vmem>>, vector<1x256xi32>,
    %c0_54 = arith.constant 0 : index
    %c128_55 = arith.constant 128 : index
    %28 = vector.load %arg7[%c0_54, %c128_55] : memref<1x384xi32, #tpu.memory_space<vmem>>, vector<1x256xi32>
    %c0_56 = arith.constant 0 : index
    %c0_57 = arith.constant 0 : index
    %29 = vector.load %arg23[%c0_56, %c0_57] : memref<1x256xi32, #tpu.memory_space<vmem>>, vector<1x256xi32>
    tpu.vector_store %arg23[%c0_56, %c0_57], %28 {strides = array<i32>} : memref<1x256xi32, #tpu.memory_space<vmem>>, vector<1x256xi32>,
    %c0_58 = arith.constant 0 : index
    %c128_59 = arith.constant 128 : index
    %30 = vector.load %arg8[%c0_58, %c128_59] : memref<1x384xf32, #tpu.memory_space<vmem>>, vector<1x256xf32>
    %c0_60 = arith.constant 0 : index
    %c0_61 = arith.constant 0 : index
    %31 = vector.load %arg24[%c0_60, %c0_61] : memref<1x256xf32, #tpu.memory_space<vmem>>, vector<1x256xf32>
    tpu.vector_store %arg24[%c0_60, %c0_61], %30 {strides = array<i32>} : memref<1x256xf32, #tpu.memory_space<vmem>>, vector<1x256xf32>,
    return
  }
  func.func @transform_0(%arg0: i32) -> (i32, i32) {
    %c0_i32 = arith.constant 0 : i32
    %c0_i32_0 = arith.constant 0 : i32
    %c0_i32_1 = arith.constant 0 : i32
    return %c0_i32, %c0_i32_0 : i32, i32
  }
  func.func @transform_1(%arg0: i32) -> (i32, i32) {
    %c0_i32 = arith.constant 0 : i32
    %c0_i32_0 = arith.constant 0 : i32
    %c0_i32_1 = arith.constant 0 : i32
    return %c0_i32, %c0_i32_0 : i32, i32
  }
  func.func @transform_2(%arg0: i32) -> (i32, i32) {
    %c0_i32 = arith.constant 0 : i32
    %c0_i32_0 = arith.constant 0 : i32
    %c0_i32_1 = arith.constant 0 : i32
    return %c0_i32, %c0_i32_0 : i32, i32
  }
  func.func @transform_3(%arg0: i32) -> (i32, i32) {
    %c0_i32 = arith.constant 0 : i32
    %c0_i32_0 = arith.constant 0 : i32
    %c0_i32_1 = arith.constant 0 : i32
    return %c0_i32, %c0_i32_0 : i32, i32
  }
  func.func @transform_4(%arg0: i32) -> (i32, i32) {
    %c0_i32 = arith.constant 0 : i32
    %c0_i32_0 = arith.constant 0 : i32
    %c0_i32_1 = arith.constant 0 : i32
    return %c0_i32, %c0_i32_0 : i32, i32
  }
  func.func @transform_5(%arg0: i32) -> (i32, i32) {
    %c0_i32 = arith.constant 0 : i32
    %c0_i32_0 = arith.constant 0 : i32
    %c0_i32_1 = arith.constant 0 : i32
    return %c0_i32, %c0_i32_0 : i32, i32
  }
  func.func @transform_6(%arg0: i32) -> (i32, i32) {
    %c0_i32 = arith.constant 0 : i32
    %c0_i32_0 = arith.constant 0 : i32
    %c0_i32_1 = arith.constant 0 : i32
    return %c0_i32, %c0_i32_0 : i32, i32
  }
  func.func @transform_7(%arg0: i32) -> (i32, i32) {
    %c0_i32 = arith.constant 0 : i32
    %c0_i32_0 = arith.constant 0 : i32
    %c0_i32_1 = arith.constant 0 : i32
    return %c0_i32, %c0_i32_0 : i32, i32
  }
  func.func @transform_8(%arg0: i32) -> (i32, i32) {
    %c0_i32 = arith.constant 0 : i32
    %c0_i32_0 = arith.constant 0 : i32
    %c0_i32_1 = arith.constant 0 : i32
    return %c0_i32, %c0_i32_0 : i32, i32
  }
  func.func @transform_9(%arg0: i32) -> (i32, i32) {
    %c0_i32 = arith.constant 0 : i32
    %c0_i32_0 = arith.constant 0 : i32
    %c0_i32_1 = arith.constant 0 : i32
    return %c0_i32, %c0_i32_0 : i32, i32
  }
  func.func @transform_10(%arg0: i32) -> (i32, i32) {
    %c0_i32 = arith.constant 0 : i32
    %c0_i32_0 = arith.constant 0 : i32
    %c0_i32_1 = arith.constant 0 : i32
    return %c0_i32, %c0_i32_0 : i32, i32
  }
  func.func @transform_11(%arg0: i32) -> (i32, i32) {
    %c0_i32 = arith.constant 0 : i32
    %c0_i32_0 = arith.constant 0 : i32
    %c0_i32_1 = arith.constant 0 : i32
    return %c0_i32, %c0_i32_0 : i32, i32
  }
  func.func @transform_12(%arg0: i32) -> (i32, i32) {
    %c0_i32 = arith.constant 0 : i32
    %c0_i32_0 = arith.constant 0 : i32
    %c0_i32_1 = arith.constant 0 : i32
    return %c0_i32, %c0_i32_0 : i32, i32
  }
  func.func @transform_13(%arg0: i32) -> (i32, i32) {
    %c0_i32 = arith.constant 0 : i32
    %c0_i32_0 = arith.constant 0 : i32
    %c0_i32_1 = arith.constant 0 : i32
    return %c0_i32, %c0_i32_0 : i32, i32
  }
  func.func @transform_14(%arg0: i32) -> (i32, i32) {
    %c0_i32 = arith.constant 0 : i32
    %c0_i32_0 = arith.constant 0 : i32
    %c0_i32_1 = arith.constant 0 : i32
    return %c0_i32, %c0_i32_0 : i32, i32
  }
  func.func @transform_15(%arg0: i32) -> (i32, i32) {
    %c0_i32 = arith.constant 0 : i32
    %c0_i32_0 = arith.constant 0 : i32
    %c0_i32_1 = arith.constant 0 : i32
    return %c0_i32, %c0_i32_0 : i32, i32
  }
  func.func @transform_16(%arg0: i32) -> (i32, i32) {
    %c0_i32 = arith.constant 0 : i32
    %c0_i32_0 = arith.constant 0 : i32
    %c0_i32_1 = arith.constant 0 : i32
    return %c0_i32, %c0_i32_0 : i32, i32
  }
  func.func @transform_17(%arg0: i32) -> (i32, i32) {
    %c0_i32 = arith.constant 0 : i32
    %c0_i32_0 = arith.constant 0 : i32
    %c0_i32_1 = arith.constant 0 : i32
    return %c0_i32, %c0_i32_0 : i32, i32
  }
  func.func @transform_18(%arg0: i32) -> (i32, i32) {
    %c0_i32 = arith.constant 0 : i32
    %c0_i32_0 = arith.constant 0 : i32
    %c0_i32_1 = arith.constant 0 : i32
    return %c0_i32, %c0_i32_0 : i32, i32
  }
  func.func @transform_19(%arg0: i32) -> (i32, i32) {
    %c0_i32 = arith.constant 0 : i32
    %c0_i32_0 = arith.constant 0 : i32
    %c0_i32_1 = arith.constant 0 : i32
    return %c0_i32, %c0_i32_0 : i32, i32
  }
  func.func @transform_20(%arg0: i32) -> (i32, i32) {
    %c0_i32 = arith.constant 0 : i32
    %c0_i32_0 = arith.constant 0 : i32
    %c0_i32_1 = arith.constant 0 : i32
    return %c0_i32, %c0_i32_0 : i32, i32
  }
  func.func @transform_21(%arg0: i32) -> (i32, i32) {
    %c0_i32 = arith.constant 0 : i32
    %c0_i32_0 = arith.constant 0 : i32
    %c0_i32_1 = arith.constant 0 : i32
    return %c0_i32, %c0_i32_0 : i32, i32
  }
  func.func @transform_22(%arg0: i32) -> (i32, i32) {
    %c0_i32 = arith.constant 0 : i32
    %c0_i32_0 = arith.constant 0 : i32
    %c0_i32_1 = arith.constant 0 : i32
    return %c0_i32, %c0_i32_0 : i32, i32
  }
  func.func @transform_23(%arg0: i32) -> (i32, i32) {
    %c0_i32 = arith.constant 0 : i32
    %c0_i32_0 = arith.constant 0 : i32
    %c0_i32_1 = arith.constant 0 : i32
    return %c0_i32, %c0_i32_0 : i32, i32
  }
}

</mosaic_0001>

<llo_original>
// kernel: tpu_custom_call.1
$region0: #{tpu_custom_call.1}
  #allocation0 [shape = 'u32[]', space=smem, size = 0x4, offset = 0x4, fixed_abs, tag = 'smem constant byte address 0x4 - core index']
  #allocation1 [shape = 'u32[144,128]{1,0:T(1,128)}', space=vmem, size = 0x12000, scoped, tag = 'internal scratch']
  %s0 = inlined_call_operand.hbm [shape: s32[1,256], index: 0, kind: input, shape index: {}]
  %s1 = inlined_call_operand.hbm [shape: s32[1,256], index: 1, kind: input, shape index: {}]
  %s2 = inlined_call_operand.hbm [shape: s32[1,256], index: 2, kind: input, shape index: {}]
  %s3 = inlined_call_operand.vmem [shape: f32[1,256], index: 3, kind: input, shape index: {}]
  %s4 = inlined_call_operand.vmem [shape: s32[1,384], index: 4, kind: input, shape index: {}]
  %s5 = inlined_call_operand.vmem [shape: s32[1,384], index: 5, kind: input, shape index: {}]
  %s6 = inlined_call_operand.vmem [shape: s32[1,384], index: 6, kind: input, shape index: {}]
  %s7 = inlined_call_operand.vmem [shape: f32[1,384], index: 7, kind: input, shape index: {}]
  %s8 = inlined_call_operand.hbm [shape: s32[1,128], index: 8, kind: output, shape index: {0}]
  %s9 = inlined_call_operand.hbm [shape: s32[1,128], index: 9, kind: output, shape index: {1}]
  %s10 = inlined_call_operand.hbm [shape: s32[1,128], index: 10, kind: output, shape index: {2}]
  %s11 = inlined_call_operand.hbm [shape: f32[1,128], index: 11, kind: output, shape index: {3}]
  %s12 = inlined_call_operand.hbm [shape: s32[1,128], index: 12, kind: output, shape index: {4}]
  %s13 = inlined_call_operand.hbm [shape: s32[1,128], index: 13, kind: output, shape index: {5}]
  %s14 = inlined_call_operand.hbm [shape: s32[1,128], index: 14, kind: output, shape index: {6}]
  %s15 = inlined_call_operand.hbm [shape: f32[1,128], index: 15, kind: output, shape index: {7}]
  %s16 = inlined_call_operand.hbm [shape: s32[1,128], index: 16, kind: output, shape index: {8}]
  %s17 = inlined_call_operand.hbm [shape: s32[1,128], index: 17, kind: output, shape index: {9}]
  %s18 = inlined_call_operand.hbm [shape: s32[1,128], index: 18, kind: output, shape index: {10}]
  %s19 = inlined_call_operand.hbm [shape: f32[1,128], index: 19, kind: output, shape index: {11}]
  %s20 = inlined_call_operand.hbm [shape: s32[1,256], index: 20, kind: output, shape index: {12}]
  %s21 = inlined_call_operand.hbm [shape: s32[1,256], index: 21, kind: output, shape index: {13}]
  %s22 = inlined_call_operand.hbm [shape: s32[1,256], index: 22, kind: output, shape index: {14}]
  %s23 = inlined_call_operand.hbm [shape: f32[1,256], index: 23, kind: output, shape index: {15}]
  %24 = xla_tuple %s8, %s9, %s10, %s11, %s12, %s13, %s14, %s15, %s16, %s17, %s18, %s19, %s20, %s21, %s22, %s23
  %s25 = sld [smem:[#allocation0]]
  $region174: #{tpu_custom_call.1} parent=0
    _
  %s27 = ssub.s32 1, %s25
  %s28 = scalar_select 0, %s27, %s25
  $region1: #{tpu_custom_call.1} parent=0
    #allocation2 [shape = 'u8[1024]{0}', space=vmem, size = 0x400, scoped, tag = 'input window, operand 0, single buffered']
    #allocation3 [shape = 's32[1]{0}', space=sflag, size = 0x4, scoped, tag = 'scoped memory for tpu_custom_call.1']
    #allocation4 [shape = 's32[1]{0}', space=sflag, size = 0x4, scoped, tag = 'scoped memory for tpu_custom_call.1']
    #allocation5 [shape = 'u8[1024]{0}', space=vmem, size = 0x400, scoped, tag = 'input window, operand 1, single buffered']
    #allocation6 [shape = 's32[1]{0}', space=sflag, size = 0x4, scoped, tag = 'scoped memory for tpu_custom_call.1']
    #allocation7 [shape = 'u8[1024]{0}', space=vmem, size = 0x400, scoped, tag = 'input window, operand 2, single buffered']
    #allocation8 [shape = 'u8[512]{0}', space=vmem, size = 0x400, scoped, tag = 'output window, operand 0, single buffered']
    #allocation9 [shape = 'u8[512]{0}', space=vmem, size = 0x400, scoped, tag = 'output window, operand 1, single buffered']
    #allocation10 [shape = 's32[1]{0}', space=sflag, size = 0x4, scoped, tag = 'scoped memory for tpu_custom_call.1']
    #allocation11 [shape = 'u8[512]{0}', space=vmem, size = 0x400, scoped, tag = 'output window, operand 2, single buffered']
    #allocation12 [shape = 'u8[512]{0}', space=vmem, size = 0x400, scoped, tag = 'output window, operand 3, single buffered']
    #allocation13 [shape = 's32[1]{0}', space=sflag, size = 0x4, scoped, tag = 'scoped memory for tpu_custom_call.1']
    #allocation14 [shape = 'u8[512]{0}', space=vmem, size = 0x400, scoped, tag = 'output window, operand 4, single buffered']
    #allocation15 [shape = 'u8[512]{0}', space=vmem, size = 0x400, scoped, tag = 'output window, operand 5, single buffered']
    #allocation16 [shape = 's32[1]{0}', space=sflag, size = 0x4, scoped, tag = 'scoped memory for tpu_custom_call.1']
    #allocation17 [shape = 'u8[512]{0}', space=vmem, size = 0x400, scoped, tag = 'output window, operand 6, single buffered']
    #allocation18 [shape = 'u8[512]{0}', space=vmem, size = 0x400, scoped, tag = 'output window, operand 7, single buffered']
    #allocation19 [shape = 's32[1]{0}', space=sflag, size = 0x4, scoped, tag = 'scoped memory for tpu_custom_call.1']
    #allocation20 [shape = 'u8[512]{0}', space=vmem, size = 0x400, scoped, tag = 'output window, operand 8, single buffered']
    #allocation21 [shape = 'u8[512]{0}', space=vmem, size = 0x400, scoped, tag = 'output window, operand 9, single buffered']
    #allocation22 [shape = 's32[1]{0}', space=sflag, size = 0x4, scoped, tag = 'scoped memory for tpu_custom_call.1']
    #allocation23 [shape = 'u8[512]{0}', space=vmem, size = 0x400, scoped, tag = 'output window, operand 10, single buffered']
    #allocation24 [shape = 'u8[512]{0}', space=vmem, size = 0x400, scoped, tag = 'output window, operand 11, single buffered']
    #allocation25 [shape = 's32[1]{0}', space=sflag, size = 0x4, scoped, tag = 'scoped memory for tpu_custom_call.1']
    #allocation26 [shape = 'u8[1024]{0}', space=vmem, size = 0x400, scoped, tag = 'output window, operand 12, single buffered']
    #allocation27 [shape = 'u8[1024]{0}', space=vmem, size = 0x400, scoped, tag = 'output window, operand 13, single buffered']
    #allocation28 [shape = 's32[1]{0}', space=sflag, size = 0x4, scoped, tag = 'scoped memory for tpu_custom_call.1']
    #allocation29 [shape = 'u8[1024]{0}', space=vmem, size = 0x400, scoped, tag = 'output window, operand 14, single buffered']
    #allocation30 [shape = 'u8[1024]{0}', space=vmem, size = 0x400, scoped, tag = 'output window, operand 15, single buffered']
    #allocation31 [shape = 's32[1]{0}', space=sflag, size = 0x4, scoped, tag = 'scoped memory for tpu_custom_call.1']
    %29 = vsyncpa [#allocation3], 0
    %30 = vsyncpa [#allocation6], 0
    %31 = vsyncpa [#allocation4], 0
    %32 = vsyncpa [#allocation10], 0
    %33 = vsyncpa [#allocation13], 0
    %34 = vsyncpa [#allocation16], 0
    %35 = vsyncpa [#allocation19], 0
    %36 = vsyncpa [#allocation22], 0
    %37 = vsyncpa [#allocation25], 0
    %38 = vsyncpa [#allocation28], 0
    %39 = vsyncpa [#allocation31], 0
    // Predicated region
    $region2: #{tpu_custom_call.1} parent=1 // pred_check
      _
    $region3: #{tpu_custom_call.1} parent=1 // pred_check_branch
      %41 = sbr.rel (0) target = $region5
    $region4: #{tpu_custom_call.1} parent=1 // pred_region
      %s43 = ssub.s32 32, 32
      %44 = vsyncadd [#allocation3], %s43
      %s46 = sshll.u32 [#allocation2], 4
      %s47 = int_to_ptr.vmem [resolvable:$true] %s46
      %49 = dma.hbm_to_vmem [thread:$0]  %s0, 32, %s47, [#allocation3]
    $region5: #{tpu_custom_call.1} parent=1 // pred_fallthru
      _
    // Predicated region
    $region6: #{tpu_custom_call.1} parent=1 // pred_check
      _
    $region7: #{tpu_custom_call.1} parent=1 // pred_check_branch
      %51 = sbr.rel (0) target = $region9
    $region8: #{tpu_custom_call.1} parent=1 // pred_region
      %s53 = ssub.s32 32, 32
      %54 = vsyncadd [#allocation6], %s53
      %s56 = sshll.u32 [#allocation5], 4
      %s57 = int_to_ptr.vmem [resolvable:$true] %s56
      %59 = dma.hbm_to_vmem [thread:$0]  %s1, 32, %s57, [#allocation6]
    $region9: #{tpu_custom_call.1} parent=1 // pred_fallthru
      _
    // Predicated region
    $region10: #{tpu_custom_call.1} parent=1 // pred_check
      _
    $region11: #{tpu_custom_call.1} parent=1 // pred_check_branch
      %61 = sbr.rel (0) target = $region13
    $region12: #{tpu_custom_call.1} parent=1 // pred_region
      %s63 = ssub.s32 32, 32
      %64 = vsyncadd [#allocation6], %s63
      %s66 = sshll.u32 [#allocation7], 4
      %s67 = int_to_ptr.vmem [resolvable:$true] %s66
      %69 = dma.hbm_to_vmem [thread:$0]  %s2, 32, %s67, [#allocation6]
    $region13: #{tpu_custom_call.1} parent=1 // pred_fallthru
      _
    // Predicated region
    $region14: #{tpu_custom_call.1} parent=1 // pred_check
      _
    $region15: #{tpu_custom_call.1} parent=1 // pred_check_branch
      %71 = sbr.rel (0) target = $region17
    $region16: #{tpu_custom_call.1} parent=1 // pred_region
      _
    $region17: #{tpu_custom_call.1} parent=1 // pred_fallthru
      _
    // Predicated region
    $region18: #{tpu_custom_call.1} parent=1 // pred_check
      _
    $region19: #{tpu_custom_call.1} parent=1 // pred_check_branch
      %73 = sbr.rel (0) target = $region21
    $region20: #{tpu_custom_call.1} parent=1 // pred_region
      _
    $region21: #{tpu_custom_call.1} parent=1 // pred_fallthru
      _
    // Predicated region
    $region22: #{tpu_custom_call.1} parent=1 // pred_check
      _
    $region23: #{tpu_custom_call.1} parent=1 // pred_check_branch
      %75 = sbr.rel (0) target = $region25
    $region24: #{tpu_custom_call.1} parent=1 // pred_region
      _
    $region25: #{tpu_custom_call.1} parent=1 // pred_fallthru
      _
    // Predicated region
    $region26: #{tpu_custom_call.1} parent=1 // pred_check
      _
    $region27: #{tpu_custom_call.1} parent=1 // pred_check_branch
      %77 = sbr.rel (0) target = $region29
    $region28: #{tpu_custom_call.1} parent=1 // pred_region
      _
    $region29: #{tpu_custom_call.1} parent=1 // pred_fallthru
      _
    // Predicated region
    $region30: #{tpu_custom_call.1} parent=1 // pred_check
      _
    $region31: #{tpu_custom_call.1} parent=1 // pred_check_branch
      %79 = sbr.rel (0) target = $region33
    $region32: #{tpu_custom_call.1} parent=1 // pred_region
      _
    $region33: #{tpu_custom_call.1} parent=1 // pred_fallthru
      _
    // Predicated region
    $region34: #{tpu_custom_call.1} parent=1 // pred_check
      _
    $region35: #{tpu_custom_call.1} parent=1 // pred_check_branch
      %81 = sbr.rel (0) target = $region37
    $region36: #{tpu_custom_call.1} parent=1 // pred_region
      %82 = dma.done [#allocation3], 32
    $region37: #{tpu_custom_call.1} parent=1 // pred_fallthru
      _
    // Predicated region
    $region38: #{tpu_custom_call.1} parent=1 // pred_check
      _
    $region39: #{tpu_custom_call.1} parent=1 // pred_check_branch
      %84 = sbr.rel (0) target = $region41
    $region40: #{tpu_custom_call.1} parent=1 // pred_region
      %85 = dma.done [#allocation6], 32
    $region41: #{tpu_custom_call.1} parent=1 // pred_fallthru
      _
    // Predicated region
    $region42: #{tpu_custom_call.1} parent=1 // pred_check
      _
    $region43: #{tpu_custom_call.1} parent=1 // pred_check_branch
      %87 = sbr.rel (0) target = $region45
    $region44: #{tpu_custom_call.1} parent=1 // pred_region
      %88 = dma.done [#allocation6], 32
    $region45: #{tpu_custom_call.1} parent=1 // pred_fallthru
      _
    %v89 = vld [vmem:[#allocation2] sm:$0x1]
    %90 = vst [vmem:[#allocation8] sm:$0x1] %v89
    %v91 = vld [vmem:[#allocation5] sm:$0x1]
    %92 = vst [vmem:[#allocation9] sm:$0x1] %v91
    %v93 = vld [vmem:[#allocation7] sm:$0x1]
    %94 = vst [vmem:[#allocation11] sm:$0x1] %v93
    %v95 = vld [vmem:[%s3] sm:$0x1]
    %96 = vst [vmem:[#allocation12] sm:$0x1] %v95
    %v97 = vld [vmem:[#allocation2 + $0x1] sm:$0x1]
    %98 = vst [vmem:[#allocation14] sm:$0x1] %v97
    %v99 = vld [vmem:[#allocation5 + $0x1] sm:$0x1]
    %100 = vst [vmem:[#allocation15] sm:$0x1] %v99
    %v101 = vld [vmem:[#allocation7 + $0x1] sm:$0x1]
    %102 = vst [vmem:[#allocation17] sm:$0x1] %v101
    %v103 = vld [vmem:[%s3 + $0x1] sm:$0x1]
    %104 = vst [vmem:[#allocation18] sm:$0x1] %v103
    %v105 = vld [vmem:[%s4] sm:$0x1]
    %106 = vst [vmem:[#allocation20] sm:$0x1] %v105
    %v107 = vld [vmem:[%s5] sm:$0x1]
    %108 = vst [vmem:[#allocation21] sm:$0x1] %v107
    %v109 = vld [vmem:[%s6] sm:$0x1]
    %110 = vst [vmem:[#allocation23] sm:$0x1] %v109
    %v111 = vld [vmem:[%s7] sm:$0x1]
    %112 = vst [vmem:[#allocation24] sm:$0x1] %v111
    %v113 = vld [vmem:[%s4 + $0x1] sm:$0x3]
    %v114 = vlaneseq
    %vm115 = vcmp.ge.s32.totalorder %v114, 0
    %vm116 = vcmp.lt.s32.totalorder %v114, 256
    %vm117 = vmand %vm115, %vm116
    %118 = vst.msk [vmem:[#allocation26] sm:$0x3] %vm117, %v113
    %v119 = vld [vmem:[%s5 + $0x1] sm:$0x3]
    %120 = vst.msk [vmem:[#allocation27] sm:$0x3] %vm117, %v119
    %v121 = vld [vmem:[%s6 + $0x1] sm:$0x3]
    %122 = vst.msk [vmem:[#allocation29] sm:$0x3] %vm117, %v121
    %v123 = vld [vmem:[%s7 + $0x1] sm:$0x3]
    %124 = vst.msk [vmem:[#allocation30] sm:$0x3] %vm117, %v123
    // Predicated region
    $region46: #{tpu_custom_call.1} parent=1 // pred_check
      _
    $region47: #{tpu_custom_call.1} parent=1 // pred_check_branch
      %126 = sbr.rel (0) target = $region49
    $region48: #{tpu_custom_call.1} parent=1 // pred_region
      %s128 = ssub.s32 16, 16
      %129 = vsyncadd [#allocation4], %s128
      %s131 = sshll.u32 [#allocation8], 4
      %s132 = int_to_ptr.vmem [resolvable:$true] %s131
      %134 = dma.vmem_to_hbm [thread:$0]  %s132, 16, %s8, [#allocation4]
    $region49: #{tpu_custom_call.1} parent=1 // pred_fallthru
      _
    // Predicated region
    $region50: #{tpu_custom_call.1} parent=1 // pred_check
      _
    $region51: #{tpu_custom_call.1} parent=1 // pred_check_branch
      %136 = sbr.rel (0) target = $region53
    $region52: #{tpu_custom_call.1} parent=1 // pred_region
      %s138 = ssub.s32 16, 16
      %139 = vsyncadd [#allocation10], %s138
      %s141 = sshll.u32 [#allocation9], 4
      %s142 = int_to_ptr.vmem [resolvable:$true] %s141
      %144 = dma.vmem_to_hbm [thread:$0]  %s142, 16, %s9, [#allocation10]
    $region53: #{tpu_custom_call.1} parent=1 // pred_fallthru
      _
    // Predicated region
    $region54: #{tpu_custom_call.1} parent=1 // pred_check
      _
    $region55: #{tpu_custom_call.1} parent=1 // pred_check_branch
      %146 = sbr.rel (0) target = $region57
    $region56: #{tpu_custom_call.1} parent=1 // pred_region
      %s148 = ssub.s32 16, 16
      %149 = vsyncadd [#allocation10], %s148
      %s151 = sshll.u32 [#allocation11], 4
      %s152 = int_to_ptr.vmem [resolvable:$true] %s151
      %154 = dma.vmem_to_hbm [thread:$0]  %s152, 16, %s10, [#allocation10]
    $region57: #{tpu_custom_call.1} parent=1 // pred_fallthru
      _
    // Predicated region
    $region58: #{tpu_custom_call.1} parent=1 // pred_check
      _
    $region59: #{tpu_custom_call.1} parent=1 // pred_check_branch
      %156 = sbr.rel (0) target = $region61
    $region60: #{tpu_custom_call.1} parent=1 // pred_region
      %s158 = ssub.s32 16, 16
      %159 = vsyncadd [#allocation13], %s158
      %s161 = sshll.u32 [#allocation12], 4
      %s162 = int_to_ptr.vmem [resolvable:$true] %s161
      %164 = dma.vmem_to_hbm [thread:$0]  %s162, 16, %s11, [#allocation13]
    $region61: #{tpu_custom_call.1} parent=1 // pred_fallthru
      _
    // Predicated region
    $region62: #{tpu_custom_call.1} parent=1 // pred_check
      _
    $region63: #{tpu_custom_call.1} parent=1 // pred_check_branch
      %166 = sbr.rel (0) target = $region65
    $region64: #{tpu_custom_call.1} parent=1 // pred_region
      %s168 = ssub.s32 16, 16
      %169 = vsyncadd [#allocation13], %s168
      %s171 = sshll.u32 [#allocation14], 4
      %s172 = int_to_ptr.vmem [resolvable:$true] %s171
      %174 = dma.vmem_to_hbm [thread:$0]  %s172, 16, %s12, [#allocation13]
    $region65: #{tpu_custom_call.1} parent=1 // pred_fallthru
      _
    // Predicated region
    $region66: #{tpu_custom_call.1} parent=1 // pred_check
      _
    $region67: #{tpu_custom_call.1} parent=1 // pred_check_branch
      %176 = sbr.rel (0) target = $region69
    $region68: #{tpu_custom_call.1} parent=1 // pred_region
      %s178 = ssub.s32 16, 16
      %179 = vsyncadd [#allocation16], %s178
      %s181 = sshll.u32 [#allocation15], 4
      %s182 = int_to_ptr.vmem [resolvable:$true] %s181
      %184 = dma.vmem_to_hbm [thread:$0]  %s182, 16, %s13, [#allocation16]
    $region69: #{tpu_custom_call.1} parent=1 // pred_fallthru
      _
    // Predicated region
    $region70: #{tpu_custom_call.1} parent=1 // pred_check
      _
    $region71: #{tpu_custom_call.1} parent=1 // pred_check_branch
      %186 = sbr.rel (0) target = $region73
    $region72: #{tpu_custom_call.1} parent=1 // pred_region
      %s188 = ssub.s32 16, 16
      %189 = vsyncadd [#allocation16], %s188
      %s191 = sshll.u32 [#allocation17], 4
      %s192 = int_to_ptr.vmem [resolvable:$true] %s191
      %194 = dma.vmem_to_hbm [thread:$0]  %s192, 16, %s14, [#allocation16]
    $region73: #{tpu_custom_call.1} parent=1 // pred_fallthru
      _
    // Predicated region
    $region74: #{tpu_custom_call.1} parent=1 // pred_check
      _
    $region75: #{tpu_custom_call.1} parent=1 // pred_check_branch
      %196 = sbr.rel (0) target = $region77
    $region76: #{tpu_custom_call.1} parent=1 // pred_region
      %s198 = ssub.s32 16, 16
      %199 = vsyncadd [#allocation19], %s198
      %s201 = sshll.u32 [#allocation18], 4
      %s202 = int_to_ptr.vmem [resolvable:$true] %s201
      %204 = dma.vmem_to_hbm [thread:$0]  %s202, 16, %s15, [#allocation19]
    $region77: #{tpu_custom_call.1} parent=1 // pred_fallthru
      _
    // Predicated region
    $region78: #{tpu_custom_call.1} parent=1 // pred_check
      _
    $region79: #{tpu_custom_call.1} parent=1 // pred_check_branch
      %206 = sbr.rel (0) target = $region81
    $region80: #{tpu_custom_call.1} parent=1 // pred_region
      %s208 = ssub.s32 16, 16
      %209 = vsyncadd [#allocation19], %s208
      %s211 = sshll.u32 [#allocation20], 4
      %s212 = int_to_ptr.vmem [resolvable:$true] %s211
      %214 = dma.vmem_to_hbm [thread:$0]  %s212, 16, %s16, [#allocation19]
    $region81: #{tpu_custom_call.1} parent=1 // pred_fallthru
      _
    // Predicated region
    $region82: #{tpu_custom_call.1} parent=1 // pred_check
      _
    $region83: #{tpu_custom_call.1} parent=1 // pred_check_branch
      %216 = sbr.rel (0) target = $region85
    $region84: #{tpu_custom_call.1} parent=1 // pred_region
      %s218 = ssub.s32 16, 16
      %219 = vsyncadd [#allocation22], %s218
      %s221 = sshll.u32 [#allocation21], 4
      %s222 = int_to_ptr.vmem [resolvable:$true] %s221
      %224 = dma.vmem_to_hbm [thread:$0]  %s222, 16, %s17, [#allocation22]
    $region85: #{tpu_custom_call.1} parent=1 // pred_fallthru
      _
    // Predicated region
    $region86: #{tpu_custom_call.1} parent=1 // pred_check
      _
    $region87: #{tpu_custom_call.1} parent=1 // pred_check_branch
      %226 = sbr.rel (0) target = $region89
    $region88: #{tpu_custom_call.1} parent=1 // pred_region
      %s228 = ssub.s32 16, 16
      %229 = vsyncadd [#allocation22], %s228
      %s231 = sshll.u32 [#allocation23], 4
      %s232 = int_to_ptr.vmem [resolvable:$true] %s231
      %234 = dma.vmem_to_hbm [thread:$0]  %s232, 16, %s18, [#allocation22]
    $region89: #{tpu_custom_call.1} parent=1 // pred_fallthru
      _
    // Predicated region
    $region90: #{tpu_custom_call.1} parent=1 // pred_check
      _
    $region91: #{tpu_custom_call.1} parent=1 // pred_check_branch
      %236 = sbr.rel (0) target = $region93
    $region92: #{tpu_custom_call.1} parent=1 // pred_region
      %s238 = ssub.s32 16, 16
      %239 = vsyncadd [#allocation25], %s238
      %s241 = sshll.u32 [#allocation24], 4
      %s242 = int_to_ptr.vmem [resolvable:$true] %s241
      %244 = dma.vmem_to_hbm [thread:$0]  %s242, 16, %s19, [#allocation25]
    $region93: #{tpu_custom_call.1} parent=1 // pred_fallthru
      _
    // Predicated region
    $region94: #{tpu_custom_call.1} parent=1 // pred_check
      _
    $region95: #{tpu_custom_call.1} parent=1 // pred_check_branch
      %246 = sbr.rel (0) target = $region97
    $region96: #{tpu_custom_call.1} parent=1 // pred_region
      %s248 = ssub.s32 32, 32
      %249 = vsyncadd [#allocation25], %s248
      %s251 = sshll.u32 [#allocation26], 4
      %s252 = int_to_ptr.vmem [resolvable:$true] %s251
      %254 = dma.vmem_to_hbm [thread:$0]  %s252, 32, %s20, [#allocation25]
    $region97: #{tpu_custom_call.1} parent=1 // pred_fallthru
      _
    // Predicated region
    $region98: #{tpu_custom_call.1} parent=1 // pred_check
      _
    $region99: #{tpu_custom_call.1} parent=1 // pred_check_branch
      %256 = sbr.rel (0) target = $region101
    $region100: #{tpu_custom_call.1} parent=1 // pred_region
      %s258 = ssub.s32 32, 32
      %259 = vsyncadd [#allocation28], %s258
      %s261 = sshll.u32 [#allocation27], 4
      %s262 = int_to_ptr.vmem [resolvable:$true] %s261
      %264 = dma.vmem_to_hbm [thread:$0]  %s262, 32, %s21, [#allocation28]
    $region101: #{tpu_custom_call.1} parent=1 // pred_fallthru
      _
    // Predicated region
    $region102: #{tpu_custom_call.1} parent=1 // pred_check
      _
    $region103: #{tpu_custom_call.1} parent=1 // pred_check_branch
      %266 = sbr.rel (0) target = $region105
    $region104: #{tpu_custom_call.1} parent=1 // pred_region
      %s268 = ssub.s32 32, 32
      %269 = vsyncadd [#allocation28], %s268
      %s271 = sshll.u32 [#allocation29], 4
      %s272 = int_to_ptr.vmem [resolvable:$true] %s271
      %274 = dma.vmem_to_hbm [thread:$0]  %s272, 32, %s22, [#allocation28]
    $region105: #{tpu_custom_call.1} parent=1 // pred_fallthru
      _
    // Predicated region
    $region106: #{tpu_custom_call.1} parent=1 // pred_check
      _
    $region107: #{tpu_custom_call.1} parent=1 // pred_check_branch
      %276 = sbr.rel (0) target = $region109
    $region108: #{tpu_custom_call.1} parent=1 // pred_region
      %s278 = ssub.s32 32, 32
      %279 = vsyncadd [#allocation31], %s278
      %s281 = sshll.u32 [#allocation30], 4
      %s282 = int_to_ptr.vmem [resolvable:$true] %s281
      %284 = dma.vmem_to_hbm [thread:$0]  %s282, 32, %s23, [#allocation31]
    $region109: #{tpu_custom_call.1} parent=1 // pred_fallthru
      _
    // Predicated region
    $region110: #{tpu_custom_call.1} parent=1 // pred_check
      _
    $region111: #{tpu_custom_call.1} parent=1 // pred_check_branch
      %286 = sbr.rel (0) target = $region113
    $region112: #{tpu_custom_call.1} parent=1 // pred_region
      %287 = dma.done [#allocation4], 16
    $region113: #{tpu_custom_call.1} parent=1 // pred_fallthru
      _
    // Predicated region
    $region114: #{tpu_custom_call.1} parent=1 // pred_check
      _
    $region115: #{tpu_custom_call.1} parent=1 // pred_check_branch
      %289 = sbr.rel (0) target = $region117
    $region116: #{tpu_custom_call.1} parent=1 // pred_region
      %290 = dma.done [#allocation10], 16
    $region117: #{tpu_custom_call.1} parent=1 // pred_fallthru
      _
    // Predicated region
    $region118: #{tpu_custom_call.1} parent=1 // pred_check
      _
    $region119: #{tpu_custom_call.1} parent=1 // pred_check_branch
      %292 = sbr.rel (0) target = $region121
    $region120: #{tpu_custom_call.1} parent=1 // pred_region
      %293 = dma.done [#allocation10], 16
    $region121: #{tpu_custom_call.1} parent=1 // pred_fallthru
      _
    // Predicated region
    $region122: #{tpu_custom_call.1} parent=1 // pred_check
      _
    $region123: #{tpu_custom_call.1} parent=1 // pred_check_branch
      %295 = sbr.rel (0) target = $region125
    $region124: #{tpu_custom_call.1} parent=1 // pred_region
      %296 = dma.done [#allocation13], 16
    $region125: #{tpu_custom_call.1} parent=1 // pred_fallthru
      _
    // Predicated region
    $region126: #{tpu_custom_call.1} parent=1 // pred_check
      _
    $region127: #{tpu_custom_call.1} parent=1 // pred_check_branch
      %298 = sbr.rel (0) target = $region129
    $region128: #{tpu_custom_call.1} parent=1 // pred_region
      %299 = dma.done [#allocation13], 16
    $region129: #{tpu_custom_call.1} parent=1 // pred_fallthru
      _
    // Predicated region
    $region130: #{tpu_custom_call.1} parent=1 // pred_check
      _
    $region131: #{tpu_custom_call.1} parent=1 // pred_check_branch
      %301 = sbr.rel (0) target = $region133
    $region132: #{tpu_custom_call.1} parent=1 // pred_region
      %302 = dma.done [#allocation16], 16
    $region133: #{tpu_custom_call.1} parent=1 // pred_fallthru
      _
    // Predicated region
    $region134: #{tpu_custom_call.1} parent=1 // pred_check
      _
    $region135: #{tpu_custom_call.1} parent=1 // pred_check_branch
      %304 = sbr.rel (0) target = $region137
    $region136: #{tpu_custom_call.1} parent=1 // pred_region
      %305 = dma.done [#allocation16], 16
    $region137: #{tpu_custom_call.1} parent=1 // pred_fallthru
      _
    // Predicated region
    $region138: #{tpu_custom_call.1} parent=1 // pred_check
      _
    $region139: #{tpu_custom_call.1} parent=1 // pred_check_branch
      %307 = sbr.rel (0) target = $region141
    $region140: #{tpu_custom_call.1} parent=1 // pred_region
      %308 = dma.done [#allocation19], 16
    $region141: #{tpu_custom_call.1} parent=1 // pred_fallthru
      _
    // Predicated region
    $region142: #{tpu_custom_call.1} parent=1 // pred_check
      _
    $region143: #{tpu_custom_call.1} parent=1 // pred_check_branch
      %310 = sbr.rel (0) target = $region145
    $region144: #{tpu_custom_call.1} parent=1 // pred_region
      %311 = dma.done [#allocation19], 16
    $region145: #{tpu_custom_call.1} parent=1 // pred_fallthru
      _
    // Predicated region
    $region146: #{tpu_custom_call.1} parent=1 // pred_check
      _
    $region147: #{tpu_custom_call.1} parent=1 // pred_check_branch
      %313 = sbr.rel (0) target = $region149
    $region148: #{tpu_custom_call.1} parent=1 // pred_region
      %314 = dma.done [#allocation22], 16
    $region149: #{tpu_custom_call.1} parent=1 // pred_fallthru
      _
    // Predicated region
    $region150: #{tpu_custom_call.1} parent=1 // pred_check
      _
    $region151: #{tpu_custom_call.1} parent=1 // pred_check_branch
      %316 = sbr.rel (0) target = $region153
    $region152: #{tpu_custom_call.1} parent=1 // pred_region
      %317 = dma.done [#allocation22], 16
    $region153: #{tpu_custom_call.1} parent=1 // pred_fallthru
      _
    // Predicated region
    $region154: #{tpu_custom_call.1} parent=1 // pred_check
      _
    $region155: #{tpu_custom_call.1} parent=1 // pred_check_branch
      %319 = sbr.rel (0) target = $region157
    $region156: #{tpu_custom_call.1} parent=1 // pred_region
      %320 = dma.done [#allocation25], 16
    $region157: #{tpu_custom_call.1} parent=1 // pred_fallthru
      _
    // Predicated region
    $region158: #{tpu_custom_call.1} parent=1 // pred_check
      _
    $region159: #{tpu_custom_call.1} parent=1 // pred_check_branch
      %322 = sbr.rel (0) target = $region161
    $region160: #{tpu_custom_call.1} parent=1 // pred_region
      %323 = dma.done [#allocation25], 32
    $region161: #{tpu_custom_call.1} parent=1 // pred_fallthru
      _
    // Predicated region
    $region162: #{tpu_custom_call.1} parent=1 // pred_check
      _
    $region163: #{tpu_custom_call.1} parent=1 // pred_check_branch
      %325 = sbr.rel (0) target = $region165
    $region164: #{tpu_custom_call.1} parent=1 // pred_region
      %326 = dma.done [#allocation28], 32
    $region165: #{tpu_custom_call.1} parent=1 // pred_fallthru
      _
    // Predicated region
    $region166: #{tpu_custom_call.1} parent=1 // pred_check
      _
    $region167: #{tpu_custom_call.1} parent=1 // pred_check_branch
      %328 = sbr.rel (0) target = $region169
    $region168: #{tpu_custom_call.1} parent=1 // pred_region
      %329 = dma.done [#allocation28], 32
    $region169: #{tpu_custom_call.1} parent=1 // pred_fallthru
      _
    // Predicated region
    $region170: #{tpu_custom_call.1} parent=1 // pred_check
      _
    $region171: #{tpu_custom_call.1} parent=1 // pred_check_branch
      %331 = sbr.rel (0) target = $region173
    $region172: #{tpu_custom_call.1} parent=1 // pred_region
      %332 = dma.done [#allocation31], 32
    $region173: #{tpu_custom_call.1} parent=1 // pred_fallthru
      _
    %333 = vsyncpa [#allocation3], 1
    %334 = vsyncpa [#allocation6], 1
    %335 = vsyncpa [#allocation4], 1
    %336 = vsyncpa [#allocation10], 1
    %337 = vsyncpa [#allocation13], 1
    %338 = vsyncpa [#allocation16], 1
    %339 = vsyncpa [#allocation19], 1
    %340 = vsyncpa [#allocation22], 1
    %341 = vsyncpa [#allocation25], 1
    %342 = vsyncpa [#allocation28], 1
    %343 = vsyncpa [#allocation31], 1

</llo_original>
